<compile_context>
chip_gen: v7x
topology: tpu7x:2x2x1
jax: 0.10.0
libtpu: 0.0.40
codegen_flags: <defaults>
</compile_context>

<pallas_src>
import functools

import jax
import jax.numpy as jnp
from jax import lax
from jax.experimental import pallas as pl
from jax.experimental.pallas import tpu as pltpu


def _attn_kernel(nodal_att_type, n_real, tq, tk, ragged_k,
                 len_ref, q_ref, k_ref, w_ref, b_ref, o_ref,
                 x_sc, acc_sc, den_sc):
    """One (batch, query-tile, kv-tile) grid step with online accumulation.

    len_ref : SMEM (B,) int32   -- scalar-prefetched lengths
    q_ref   : VMEM (1, TQ, V)   -- query rows of features[b]   (orig dtype)
    k_ref   : VMEM (1, TK, V)   -- kv rows of features[b]      (orig dtype)
    w_ref   : VMEM (V, V)       -- Linear weight, un-transposed (resident)
    b_ref   : VMEM (1, V)       -- Linear bias                  (resident)
    o_ref   : VMEM (1, TQ, V)   -- output block (orig dtype, constant over kv)
    x_sc    : VMEM (TQ, V)      -- transformed queries (input dtype)
    acc_sc  : VMEM (TQ, V) f32  -- running sum over kv of p @ K
    den_sc  : VMEM (TQ, 1) f32  -- running sum over kv of sum(p)
    """
    b_idx = pl.program_id(0)
    q_idx = pl.program_id(1)
    kv_idx = pl.program_id(2)
    n_kv = pl.num_programs(2)

    @pl.when(kv_idx == 0)
    def _init():
        q = q_ref[0]                                              # (TQ, V)
        # Linear: x = q @ W^T + b, written as an NT contraction (no transpose),
        # f32 accumulation, stored back in the input dtype so the score matmul
        # uses the MXU's native (bf16) path when applicable.
        x = lax.dot_general(
            q, w_ref[...],
            dimension_numbers=(((1,), (1,)), ((), ())),
            preferred_element_type=jnp.float32,
        ) + b_ref[...].astype(jnp.float32)
        x_sc[...] = x.astype(x_sc.dtype)
        acc_sc[...] = jnp.zeros_like(acc_sc)
        den_sc[...] = jnp.zeros_like(den_sc)

    def _compute():
        k = k_ref[0]                                              # (TK, V)
        if ragged_k:
            # Zero garbage rows of the ragged tail kv tile so 0 * garbage
            # cannot inject NaN into the p @ K matmul.
            k_row = lax.broadcasted_iota(jnp.int32, (tk, 1), 0) + kv_idx * tk
            k = jnp.where(k_row < n_real, k, jnp.zeros_like(k))

        # scores = x @ K^T (NT matmul via dot_general, f32 accumulation)
        s = lax.dot_general(
            x_sc[...], k,
            dimension_numbers=(((1,), (1,)), ((), ())),
            preferred_element_type=jnp.float32,
        )                                                         # (TQ, TK)

        # softmax(tanh(s)) * m / sum(softmax(tanh(s)) * m) folds algebraically
        # to exp(tanh(s)) * m / sum(exp(tanh(s)) * m); tanh is bounded so exp
        # cannot overflow -> no max tracking, plain running sums suffice.
        # TODO(synk): if a bundle dump shows the EUP slot saturating at small V,
        # replace tanh with a VPU rational approximation.
        e = jnp.exp(jnp.tanh(s))                                  # f32 VPU/EUP

        seq_len = len_ref[b_idx]
        col = lax.broadcasted_iota(jnp.int32, (tq, tk), 1) + kv_idx * tk
        mask = col < seq_len                                      # padding mask
        if nodal_att_type == "past":
            row = lax.broadcasted_iota(jnp.int32, (tq, tk), 0) + q_idx * tq
            mask = jnp.logical_and(mask, col <= row)              # causal mask
        p = jnp.where(mask, e, 0.0)                               # f32

        den_sc[...] += jnp.sum(p, axis=-1, keepdims=True)
        # p @ K in the K dtype (bf16 MXU path when applicable), f32 accumulate.
        acc_sc[...] += lax.dot_general(
            p.astype(k.dtype), k,
            dimension_numbers=(((1,), (0,)), ((), ())),
            preferred_element_type=jnp.float32,
        )

    if nodal_att_type == "past":
        # Skip kv tiles lying entirely above the causal diagonal.
        @pl.when(kv_idx * tk <= q_idx * tq + (tq - 1))
        def _():
            _compute()
    else:
        _compute()

    @pl.when(kv_idx == n_kv - 1)
    def _finalize():
        # NOTE: a fully-masked row (length == 0) yields NaN, exactly like the
        # PyTorch reference. approx reciprocal (EUP) adds ~1e-3 rel error.
        out = acc_sc[...] * pl.reciprocal(den_sc[...], approx=True)
        o_ref[0] = out.astype(o_ref.dtype)


def attentive_node_features(features, lengths, nodal_att_type, weight, bias):
    """features: (B, N, V), lengths: (B,), weight: (V, V), bias: (V,)."""
    if nodal_att_type is None:
        return features

    B, N, V = features.shape
    in_dtype = features.dtype
    lengths = lengths.astype(jnp.int32)
    weight = weight.astype(in_dtype)
    bias = bias.astype(in_dtype).reshape(1, V)

    # Per-generation tile caps: smaller query tile on 64 MiB-VMEM parts (v7x),
    # bigger tile (fewer grid steps) on 128 MiB parts. Full-dim blocks for
    # small N avoid any HBM-side padding pass.
    try:
        vmem_cap = int(pltpu.get_tpu_info().vmem_capacity_bytes)
    except Exception:
        vmem_cap = 64 << 20
    tq_cap = 256 if vmem_cap >= (96 << 20) else 128
    tk_cap = 512
    TQ = N if N <= tq_cap else tq_cap
    TK = N if N <= tk_cap else tk_cap
    n_qt = pl.cdiv(N, TQ)
    n_kt = pl.cdiv(N, TK)
    ragged_k = (N % TK) != 0

    kernel = functools.partial(_attn_kernel, nodal_att_type, N, TQ, TK, ragged_k)

    grid_spec = pltpu.PrefetchScalarGridSpec(
        num_scalar_prefetch=1,
        grid=(B, n_qt, n_kt),
        in_specs=[
            pl.BlockSpec((1, TQ, V), lambda bi, qi, ki, lens: (bi, qi, 0)),
            pl.BlockSpec((1, TK, V), lambda bi, qi, ki, lens: (bi, ki, 0)),
            pl.BlockSpec((V, V), lambda bi, qi, ki, lens: (0, 0)),   # resident W
            pl.BlockSpec((1, V), lambda bi, qi, ki, lens: (0, 0)),   # resident b
        ],
        out_specs=pl.BlockSpec((1, TQ, V), lambda bi, qi, ki, lens: (bi, qi, 0)),
        scratch_shapes=[
            pltpu.VMEM((TQ, V), in_dtype),       # x = q @ W^T + b
            pltpu.VMEM((TQ, V), jnp.float32),    # running p @ K
            pltpu.VMEM((TQ, 1), jnp.float32),    # running sum(p)
        ],
    )

    # VMEM budget derived from the actual block sizes, capped per generation.
    itemsize = jnp.dtype(in_dtype).itemsize
    est = (2 * itemsize * (TQ * V + TK * V + TQ * V)        # q, k, out (dbl-buf)
           + 2 * itemsize * (V * V + V)                     # weight, bias
           + 4 * (TQ * V + TQ) + itemsize * TQ * V          # scratch
           + 8 * 4 * TQ * TK)                               # score temporaries
    vmem_limit = int(min(max(4 * est, 16 << 20), int(0.75 * vmem_cap)))

    out = pl.pallas_call(
        kernel,
        out_shape=jax.ShapeDtypeStruct((B, N, V), in_dtype),
        grid_spec=grid_spec,
        compiler_params=pltpu.CompilerParams(
            dimension_semantics=("parallel", "parallel", "arbitrary"),
            vmem_limit_bytes=vmem_limit,
        ),
    )(lengths, features, features, weight, bias)

    return out


def _reference(features, lengths, nodal_att_type, weight, bias):
    """Plain-JAX reference mirroring the PyTorch forward, for verification."""
    B, N, V = features.shape
    pad = (jnp.arange(N)[None, :] < lengths[:, None]).astype(features.dtype)
    causal = jnp.tril(jnp.ones((N, N), features.dtype))[None]
    if nodal_att_type == "global":
        mask = pad[:, None, :]
    else:  # 'past'
        mask = pad[:, None, :] * causal
    x = features @ weight.T + bias
    temp = jnp.einsum("bnv,bmv->bnm", x, features)
    alpha = jax.nn.softmax(jnp.tanh(temp), axis=2)
    am = alpha * mask
    alpha = am / jnp.sum(am, axis=2, keepdims=True)
    return jnp.einsum("bnm,bmv->bnv", alpha, features)


if __name__ == "__main__":
    B, N, V = 2, 8, 32  # batch, seq-len (nodes), hidden_size

    key = jax.random.PRNGKey(0)
    k_feat, k_w, k_b = jax.random.split(key, 3)

    features = jax.random.normal(k_feat, (B, N, V), dtype=jnp.float32)
    lengths = jnp.array([8, 5], dtype=jnp.int32)

    # Deterministic Linear(hidden, hidden) params (PyTorch-style uniform range).
    bound = 1.0 / (V ** 0.5)
    weight = jax.random.uniform(k_w, (V, V), jnp.float32, -bound, bound)
    bias = jax.random.uniform(k_b, (V,), jnp.float32, -bound, bound)

    for att_type in ("global", "past"):
        out = attentive_node_features(features, lengths, att_type, weight, bias)
        out = jax.block_until_ready(out)
        ref = _reference(features, lengths, att_type, weight, bias)
        assert out.shape == (B, N, V)
        err = float(jnp.max(jnp.abs(out - ref)))
        # approx reciprocal (EUP) loosens tolerance slightly vs the f32 reference.
        assert jnp.allclose(out, ref, atol=2e-3, rtol=2e-3), (att_type, err)

    # nodal_att_type == None -> identity passthrough
    ident = attentive_node_features(features, lengths, None, weight, bias)
    assert jnp.array_equal(ident, features)

    print("KERNEL_OK")
</pallas_src>

<mosaic_0001>
module attributes {stable_mosaic.version = 11 : i64} {
  func.func @_attn_kernel(%arg0: i32, %arg1: i32, %arg2: i32, %arg3: memref<2xi32, #tpu.memory_space<smem>>, %arg4: memref<1x8x32xf32, #tpu.memory_space<vmem>>, %arg5: memref<1x8x32xf32, #tpu.memory_space<vmem>>, %arg6: memref<32x32xf32, #tpu.memory_space<vmem>>, %arg7: memref<1x32xf32, #tpu.memory_space<vmem>>, %arg8: memref<1x8x32xf32, #tpu.memory_space<vmem>>, %arg9: memref<8x32xf32, #tpu.memory_space<vmem>>, %arg10: memref<8x32xf32, #tpu.memory_space<vmem>>, %arg11: memref<8x1xf32, #tpu.memory_space<vmem>>) attributes {dimension_semantics = [#tpu.dimension_semantics<parallel>, #tpu.dimension_semantics<parallel>, #tpu.dimension_semantics<arbitrary>], iteration_bounds = array<i64: 2, 1, 1>, scalar_prefetch = 1 : i64, scratch_operands = 3 : i64, tpu.core_type = #tpu.core_type<tc>, window_params = [{transform_indices = @transform_0, window_bounds = array<i64: 1, 8, 32>}, {transform_indices = @transform_1, window_bounds = array<i64: 1, 8, 32>}, {pipeline_mode = #tpu.pipeline_mode<synchronous>, transform_indices = @transform_2, window_bounds = array<i64: 32, 32>}, {pipeline_mode = #tpu.pipeline_mode<synchronous>, transform_indices = @transform_3, window_bounds = array<i64: 1, 32>}, {transform_indices = @transform_4, window_bounds = array<i64: 1, 8, 32>}]} {
    %c0_i32 = arith.constant 0 : i32
    %0 = arith.cmpi eq, %arg2, %c0_i32 : i32
    %1 = arith.extui %0 : i1 to i32
    %c0_i32_0 = arith.constant 0 : i32
    %2 = arith.cmpi ne, %1, %c0_i32_0 : i32
    scf.if %2 {
      %c0_18 = arith.constant 0 : index
      %c0_19 = arith.constant 0 : index
      %c0_20 = arith.constant 0 : index
      %31 = vector.load %arg4[%c0_18, %c0_19, %c0_20] : memref<1x8x32xf32, #tpu.memory_space<vmem>>, vector<1x8x32xf32>
      %32 = vector.shape_cast %31 : vector<1x8x32xf32> to vector<8x32xf32>
      %c0_21 = arith.constant 0 : index
      %c0_22 = arith.constant 0 : index
      %33 = vector.load %arg6[%c0_21, %c0_22] : memref<32x32xf32, #tpu.memory_space<vmem>>, vector<32x32xf32>
      %cst_23 = arith.constant dense<0.000000e+00> : vector<8x32xf32>
      %34 = tpu.matmul %32, %33, %cst_23 {dimension_numbers = #tpu.dot_dimension_numbers<[1], [1], [0], [0], [0, 0, 1, 0], [], []>} : vector<8x32xf32>, vector<32x32xf32>, vector<8x32xf32> -> vector<8x32xf32>
      %c0_24 = arith.constant 0 : index
      %c0_25 = arith.constant 0 : index
      %35 = vector.load %arg7[%c0_24, %c0_25] : memref<1x32xf32, #tpu.memory_space<vmem>>, vector<1x32xf32>
      %36 = vector.broadcast %35 : vector<1x32xf32> to vector<8x32xf32>
      %37 = arith.addf %34, %36 : vector<8x32xf32>
      %c0_26 = arith.constant 0 : index
      %c0_27 = arith.constant 0 : index
      %38 = vector.load %arg9[%c0_26, %c0_27] : memref<8x32xf32, #tpu.memory_space<vmem>>, vector<8x32xf32>
      tpu.vector_store %arg9[%c0_26, %c0_27], %37 {strides = array<i32>} : memref<8x32xf32, #tpu.memory_space<vmem>>, vector<8x32xf32>,
      %cst_28 = arith.constant 0.000000e+00 : f32
      %39 = vector.broadcast %cst_28 : f32 to vector<8x32xf32>
      %c0_29 = arith.constant 0 : index
      %c0_30 = arith.constant 0 : index
      %40 = vector.load %arg10[%c0_29, %c0_30] : memref<8x32xf32, #tpu.memory_space<vmem>>, vector<8x32xf32>
      tpu.vector_store %arg10[%c0_29, %c0_30], %39 {strides = array<i32>} : memref<8x32xf32, #tpu.memory_space<vmem>>, vector<8x32xf32>,
      %cst_31 = arith.constant 0.000000e+00 : f32
      %41 = vector.broadcast %cst_31 : f32 to vector<8x1xf32>
      %c0_32 = arith.constant 0 : index
      %c0_33 = arith.constant 0 : index
      %42 = vector.load %arg11[%c0_32, %c0_33] : memref<8x1xf32, #tpu.memory_space<vmem>>, vector<8x1xf32>
      tpu.vector_store %arg11[%c0_32, %c0_33], %41 {strides = array<i32>} : memref<8x1xf32, #tpu.memory_space<vmem>>, vector<8x1xf32>,
    } else {
    }
    %c0 = arith.constant 0 : index
    %c0_1 = arith.constant 0 : index
    %c0_2 = arith.constant 0 : index
    %3 = vector.load %arg5[%c0, %c0_1, %c0_2] : memref<1x8x32xf32, #tpu.memory_space<vmem>>, vector<1x8x32xf32>
    %4 = vector.shape_cast %3 : vector<1x8x32xf32> to vector<8x32xf32>
    %c0_3 = arith.constant 0 : index
    %c0_4 = arith.constant 0 : index
    %5 = vector.load %arg9[%c0_3, %c0_4] : memref<8x32xf32, #tpu.memory_space<vmem>>, vector<8x32xf32>
    %cst = arith.constant dense<0.000000e+00> : vector<8x8xf32>
    %6 = tpu.matmul %5, %4, %cst {dimension_numbers = #tpu.dot_dimension_numbers<[1], [1], [0], [0], [0, 0, 1, 0], [], []>} : vector<8x32xf32>, vector<8x32xf32>, vector<8x8xf32> -> vector<8x8xf32>
    %7 = math.tanh %6 : vector<8x8xf32>
    %8 = math.exp %7 : vector<8x8xf32>
    %9 = arith.index_cast %arg0 : i32 to index
    %10 = memref.load %arg3[%9] : memref<2xi32, #tpu.memory_space<smem>>
    %11 = tpu.iota {dimensions = array<i32: 1>} : vector<8x8xi32>
    %c8_i32 = arith.constant 8 : i32
    %12 = arith.muli %arg2, %c8_i32 : i32
    %13 = vector.broadcast %12 : i32 to vector<8x8xi32>
    %14 = arith.addi %11, %13 : vector<8x8xi32>
    %15 = vector.broadcast %10 : i32 to vector<8x8xi32>
    %16 = arith.cmpi slt, %14, %15 : vector<8x8xi32>
    %cst_5 = arith.constant 0.000000e+00 : f32
    %17 = vector.broadcast %cst_5 : f32 to vector<8x8xf32>
    %18 = arith.select %16, %8, %17 : vector<8x8xi1>, vector<8x8xf32>
    %c0_6 = arith.constant 0 : index
    %c0_7 = arith.constant 0 : index
    %19 = vector.load %arg11[%c0_6, %c0_7] : memref<8x1xf32, #tpu.memory_space<vmem>>, vector<8x1xf32>
    %cst_8 = arith.constant dense<0.000000e+00> : vector<8xf32>
    %20 = vector.multi_reduction <add>, %18, %cst_8 [1] : vector<8x8xf32> to vector<8xf32>
    %21 = vector.shape_cast %20 : vector<8xf32> to vector<8x1xf32>
    %22 = arith.addf %19, %21 : vector<8x1xf32>
    %c0_9 = arith.constant 0 : index
    %c0_10 = arith.constant 0 : index
    %23 = vector.load %arg11[%c0_9, %c0_10] : memref<8x1xf32, #tpu.memory_space<vmem>>, vector<8x1xf32>
    tpu.vector_store %arg11[%c0_9, %c0_10], %22 {strides = array<i32>} : memref<8x1xf32, #tpu.memory_space<vmem>>, vector<8x1xf32>,
    %c0_11 = arith.constant 0 : index
    %c0_12 = arith.constant 0 : index
    %24 = vector.load %arg10[%c0_11, %c0_12] : memref<8x32xf32, #tpu.memory_space<vmem>>, vector<8x32xf32>
    %cst_13 = arith.constant dense<0.000000e+00> : vector<8x32xf32>
    %25 = tpu.matmul %18, %4, %cst_13 {dimension_numbers = #tpu.dot_dimension_numbers<[1], [0], [0], [1], [0, 0, 1, 1], [], []>} : vector<8x8xf32>, vector<8x32xf32>, vector<8x32xf32> -> vector<8x32xf32>
    %26 = arith.addf %24, %25 : vector<8x32xf32>
    %c0_14 = arith.constant 0 : index
    %c0_15 = arith.constant 0 : index
    %27 = vector.load %arg10[%c0_14, %c0_15] : memref<8x32xf32, #tpu.memory_space<vmem>>, vector<8x32xf32>
    tpu.vector_store %arg10[%c0_14, %c0_15], %26 {strides = array<i32>} : memref<8x32xf32, #tpu.memory_space<vmem>>, vector<8x32xf32>,
    %c0_i32_16 = arith.constant 0 : i32
    %28 = arith.cmpi eq, %arg2, %c0_i32_16 : i32
    %29 = arith.extui %28 : i1 to i32
    %c0_i32_17 = arith.constant 0 : i32
    %30 = arith.cmpi ne, %29, %c0_i32_17 : i32
    scf.if %30 {
      %c0_18 = arith.constant 0 : index
      %c0_19 = arith.constant 0 : index
      %31 = vector.load %arg10[%c0_18, %c0_19] : memref<8x32xf32, #tpu.memory_space<vmem>>, vector<8x32xf32>
      %c0_20 = arith.constant 0 : index
      %c0_21 = arith.constant 0 : index
      %32 = vector.load %arg11[%c0_20, %c0_21] : memref<8x1xf32, #tpu.memory_space<vmem>>, vector<8x1xf32>
      %33 = tpu.reciprocal %32 {approx = true} : vector<8x1xf32> -> vector<8x1xf32>
      %34 = vector.broadcast %33 : vector<8x1xf32> to vector<8x32xf32>
      %35 = arith.mulf %31, %34 : vector<8x32xf32>
      %c0_22 = arith.constant 0 : index
      %c0_23 = arith.constant 0 : index
      %c0_24 = arith.constant 0 : index
      %36 = vector.load %arg8[%c0_22, %c0_23, %c0_24] : memref<1x8x32xf32, #tpu.memory_space<vmem>>, vector<1x8x32xf32>
      %37 = vector.shape_cast %36 : vector<1x8x32xf32> to vector<8x32xf32>
      %38 = vector.shape_cast %35 : vector<8x32xf32> to vector<1x8x32xf32>
      tpu.vector_store %arg8[%c0_22, %c0_23, %c0_24], %38 {strides = array<i32>} : memref<1x8x32xf32, #tpu.memory_space<vmem>>, vector<1x8x32xf32>,
    } else {
    }
    return
  }
  func.func @transform_0(%arg0: i32, %arg1: i32, %arg2: i32, %arg3: memref<2xi32, #tpu.memory_space<smem>>) -> (i32, i32, i32) {
    %c0_i32 = arith.constant 0 : i32
    %c0_i32_0 = arith.constant 0 : i32
    return %arg0, %arg1, %c0_i32 : i32, i32, i32
  }
  func.func @transform_1(%arg0: i32, %arg1: i32, %arg2: i32, %arg3: memref<2xi32, #tpu.memory_space<smem>>) -> (i32, i32, i32) {
    %c0_i32 = arith.constant 0 : i32
    %c0_i32_0 = arith.constant 0 : i32
    return %arg0, %arg2, %c0_i32 : i32, i32, i32
  }
  func.func @transform_2(%arg0: i32, %arg1: i32, %arg2: i32, %arg3: memref<2xi32, #tpu.memory_space<smem>>) -> (i32, i32) {
    %c0_i32 = arith.constant 0 : i32
    %c0_i32_0 = arith.constant 0 : i32
    %c0_i32_1 = arith.constant 0 : i32
    return %c0_i32, %c0_i32_0 : i32, i32
  }
  func.func @transform_3(%arg0: i32, %arg1: i32, %arg2: i32, %arg3: memref<2xi32, #tpu.memory_space<smem>>) -> (i32, i32) {
    %c0_i32 = arith.constant 0 : i32
    %c0_i32_0 = arith.constant 0 : i32
    %c0_i32_1 = arith.constant 0 : i32
    return %c0_i32, %c0_i32_0 : i32, i32
  }
  func.func @transform_4(%arg0: i32, %arg1: i32, %arg2: i32, %arg3: memref<2xi32, #tpu.memory_space<smem>>) -> (i32, i32, i32) {
    %c0_i32 = arith.constant 0 : i32
    %c0_i32_0 = arith.constant 0 : i32
    return %arg0, %arg1, %c0_i32 : i32, i32, i32
  }
}

</mosaic_0001>

<llo_original>
// kernel: tpu_custom_call.1
$region0: #{tpu_custom_call.1}
  #allocation0 [shape = 'u32[]', space=smem, size = 0x4, offset = 0x4, fixed_abs, tag = 'smem constant byte address 0x4 - core index']
  #allocation1 [shape = 'u32[144,128]{1,0:T(1,128)}', space=vmem, size = 0x12000, scoped, tag = 'internal scratch']
  #allocation2 [shape = 'f32[8,32]{1,0:T(8,128)}', space=vmem, size = 0x1000, scoped, tag = 'scratch operand']
  #allocation3 [shape = 'f32[8,32]{1,0:T(8,128)}', space=vmem, size = 0x1000, scoped, tag = 'scratch operand']
  #allocation4 [shape = 'f32[8,1]{1,0:T(8,128)}', space=vmem, size = 0x1000, scoped, tag = 'scratch operand']
  #allocation5 [shape = 's32[1]{0}', space=sflag, size = 0x4, scoped, tag = 'scoped memory for tpu_custom_call.1']
  #allocation6 [shape = 'u8[512]{0}', space=smem, size = 0x200, scoped, tag = 'prefetched SMEM operand 0']
  %s0 = inlined_call_operand.hbm [shape: s32[2], index: 0, kind: input, shape index: {}]
  %s1 = inlined_call_operand.hbm [shape: f32[2,8,32], index: 1, kind: input, shape index: {}]
  %s2 = inlined_call_operand.hbm [shape: f32[2,8,32], index: 2, kind: input, shape index: {}]
  %s3 = inlined_call_operand.hbm [shape: f32[32,32], index: 3, kind: input, shape index: {}]
  %s4 = inlined_call_operand.vmem [shape: f32[1,32], index: 4, kind: input, shape index: {}]
  %s5 = inlined_call_operand.hbm [shape: f32[2,8,32], index: 5, kind: output, shape index: {}]
  %s6 = sld [smem:[#allocation0]]
  $region69: #{tpu_custom_call.1} parent=0
    _
  %s8 = ssub.s32 1, %s6
  %s9 = scalar_select 0, %s8, %s6
  %11 = dma.hbm_to_smem %s0, 16, [#allocation6], [#allocation5]
  %12 = dma.done [#allocation5], 16
  %13 = sfence
  $region1: #{tpu_custom_call.1} parent=0
    #allocation7 [shape = 'u8[8192]{0}', space=vmem, size = 0x2000, scoped, tag = 'input window, operand 1']
    #allocation8 [shape = 's32[2]{0}', space=sflag, size = 0x8, scoped, tag = 'scoped memory for tpu_custom_call.1']
    #allocation9 [shape = 's32[2]{0}', space=sflag, size = 0x8, scoped, tag = 'scoped memory for tpu_custom_call.1']
    #allocation10 [shape = 'u8[8192]{0}', space=vmem, size = 0x2000, scoped, tag = 'input window, operand 2']
    #allocation11 [shape = 's32[2]{0}', space=sflag, size = 0x8, scoped, tag = 'scoped memory for tpu_custom_call.1']
    #allocation12 [shape = 'u8[16384]{0}', space=vmem, size = 0x4000, scoped, tag = 'input window, operand 3, single buffered']
    #allocation13 [shape = 'u8[8192]{0}', space=vmem, size = 0x2000, scoped, tag = 'output window, operand 0']
    %14 = vsyncpa [#allocation8], 0
    %s15 = scalar_lea.sflag [#allocation8], 1
    %16 = vsyncpa %s15, 0
    %17 = vsyncpa [#allocation11], 0
    %s18 = scalar_lea.sflag [#allocation11], 1
    %19 = vsyncpa %s18, 0
    %20 = vsyncpa [#allocation9], 0
    %s21 = scalar_lea.sflag [#allocation9], 1
    %22 = vsyncpa %s21, 0
    loop: start=0, step=1, limit=4
    $region2: #{tpu_custom_call.1} parent=1 // loop_pre_header
      _
    $region3: #{tpu_custom_call.1} parent=1 // loop_header
      %s24 = sphi 0, %s28
      %p25 = scmp.ge.s32.totalorder %s24, 4
      %s31 = sphi 0, %s50
      %s32 = sphi 0, %s46
      %s33 = sphi 0, %s42
      %s34 = sphi 0, %s31
      %s35 = sphi 0, %s32
      %s36 = sphi 0, %s33
      %s37 = sphi 0, %s34
      %s38 = sphi 0, %s35
      %s39 = sphi 0, %s36
      %s55 = sphi 0, %s57
      %s58 = sphi 0, %s55
      %s59 = sphi 0, %s58
      %s75 = sphi 0, %s59
      %s83 = sphi 0, %s85
      %s86 = sphi 0, %s83
      %s87 = sphi 0, %s86
      %s103 = sphi 0, %s87
      %s107 = sphi 0, %s107
      %s109 = sphi 0, %s107
      %s110 = sphi 0, %s109
      %s124 = sphi 0, %s110
      %s128 = sphi 0, %s128
      %s130 = sphi 0, %s128
      %s131 = sphi 0, %s130
      %s145 = sphi 0, %s131
      %s153 = sphi 0, %s155
      %s156 = sphi 0, %s153
      %s157 = sphi 0, %s156
      %s173 = sphi 0, %s157
    $region4: #{tpu_custom_call.1} parent=1 // loop_header_branch
      %27 = sbr.rel (%p25) target = $region8
    $region5: #{tpu_custom_call.1} parent=1 // loop_body
      %s29 = ssub.s32 %s24, 1
      %s30 = ssub.s32 %s24, 2
      %s40 = sadd.s32 1, %s33
      %p41 = scmp.ge.s32.totalorder %s40, 1
      %s42 = scalar_select %p41, 0, %s40
      %s43 = sadd.s32 1, %s32
      %s44 = scalar_select %p41, %s43, %s32
      %p45 = scmp.ge.s32.totalorder %s44, 1
      %s46 = scalar_select %p45, 0, %s44
      %s47 = sadd.s32 1, %s31
      %s48 = scalar_select %p45, %s47, %s31
      %p49 = scmp.ge.s32.totalorder %s48, 2
      %s50 = scalar_select %p49, 0, %s48
      %s51 = ssub.s32 %s31, %s50
      %s52 = ssub.s32 %s32, %s46
      %s53 = sor.u32 %s51, %s52
      %p54 = scmp.eq.s32.totalorder %s53, 0
      %s56 = sadd.s32 %s55, 1
      %s57 = scalar_select %p54, %s55, %s56
      %p60 = pneg %p54
      %p61 = scmp.eq.s32.totalorder %s24, 1
      %p62 = por %p60, %p61
      %p63 = scmp.ne.s32.totalorder %s55, %s58
      %p64 = scmp.eq.s32.totalorder %s24, 0
      %p65 = por %p63, %p64
      %p66 = scmp.ne.s32.totalorder %s55, %s58
      %p67 = scmp.eq.s32.totalorder %s29, 1
      %p68 = por %p66, %p67
      %p69 = scmp.ne.s32.totalorder %s58, %s59
      %p70 = scmp.eq.s32.totalorder %s29, 0
      %p71 = por %p69, %p70
      %p72 = scmp.ne.s32.totalorder %s58, %s59
      %p73 = scmp.eq.s32.totalorder %s30, 1
      %p74 = por %p72, %p73
      %p76 = scmp.ne.s32.totalorder %s59, %s75
      %p77 = scmp.eq.s32.totalorder %s30, 0
      %p78 = por %p76, %p77
      %s79 = ssub.s32 %s31, %s50
      %s80 = ssub.s32 %s33, %s42
      %s81 = sor.u32 %s79, %s80
      %p82 = scmp.eq.s32.totalorder %s81, 0
      %s84 = sadd.s32 %s83, 1
      %s85 = scalar_select %p82, %s83, %s84
      %p88 = pneg %p82
      %p89 = scmp.eq.s32.totalorder %s24, 1
      %p90 = por %p88, %p89
      %p91 = scmp.ne.s32.totalorder %s83, %s86
      %p92 = scmp.eq.s32.totalorder %s24, 0
      %p93 = por %p91, %p92
      %p94 = scmp.ne.s32.totalorder %s83, %s86
      %p95 = scmp.eq.s32.totalorder %s29, 1
      %p96 = por %p94, %p95
      %p97 = scmp.ne.s32.totalorder %s86, %s87
      %p98 = scmp.eq.s32.totalorder %s29, 0
      %p99 = por %p97, %p98
      %p100 = scmp.ne.s32.totalorder %s86, %s87
      %p101 = scmp.eq.s32.totalorder %s30, 1
      %p102 = por %p100, %p101
      %p104 = scmp.ne.s32.totalorder %s87, %s103
      %p105 = scmp.eq.s32.totalorder %s30, 0
      %p106 = por %p104, %p105
      %s108 = sadd.s32 %s107, 1
      %p111 = scmp.eq.s32.totalorder %s24, 1
      %p112 = scmp.ne.s32.totalorder %s107, %s109
      %p113 = scmp.eq.s32.totalorder %s24, 0
      %p114 = por %p112, %p113
      %p115 = scmp.ne.s32.totalorder %s107, %s109
      %p116 = scmp.eq.s32.totalorder %s29, 1
      %p117 = por %p115, %p116
      %p118 = scmp.ne.s32.totalorder %s109, %s110
      %p119 = scmp.eq.s32.totalorder %s29, 0
      %p120 = por %p118, %p119
      %p121 = scmp.ne.s32.totalorder %s109, %s110
      %p122 = scmp.eq.s32.totalorder %s30, 1
      %p123 = por %p121, %p122
      %p125 = scmp.ne.s32.totalorder %s110, %s124
      %p126 = scmp.eq.s32.totalorder %s30, 0
      %p127 = por %p125, %p126
      %s129 = sadd.s32 %s128, 1
      %p132 = scmp.eq.s32.totalorder %s24, 1
      %p133 = scmp.ne.s32.totalorder %s128, %s130
      %p134 = scmp.eq.s32.totalorder %s24, 0
      %p135 = por %p133, %p134
      %p136 = scmp.ne.s32.totalorder %s128, %s130
      %p137 = scmp.eq.s32.totalorder %s29, 1
      %p138 = por %p136, %p137
      %p139 = scmp.ne.s32.totalorder %s130, %s131
      %p140 = scmp.eq.s32.totalorder %s29, 0
      %p141 = por %p139, %p140
      %p142 = scmp.ne.s32.totalorder %s130, %s131
      %p143 = scmp.eq.s32.totalorder %s30, 1
      %p144 = por %p142, %p143
      %p146 = scmp.ne.s32.totalorder %s131, %s145
      %p147 = scmp.eq.s32.totalorder %s30, 0
      %p148 = por %p146, %p147
      %s149 = ssub.s32 %s31, %s50
      %s150 = ssub.s32 %s32, %s46
      %s151 = sor.u32 %s149, %s150
      %p152 = scmp.eq.s32.totalorder %s151, 0
      %s154 = sadd.s32 %s153, 1
      %s155 = scalar_select %p152, %s153, %s154
      %p158 = pneg %p152
      %p159 = scmp.eq.s32.totalorder %s24, 1
      %p160 = por %p158, %p159
      %p161 = scmp.ne.s32.totalorder %s153, %s156
      %p162 = scmp.eq.s32.totalorder %s24, 0
      %p163 = por %p161, %p162
      %p164 = scmp.ne.s32.totalorder %s153, %s156
      %p165 = scmp.eq.s32.totalorder %s29, 1
      %p166 = por %p164, %p165
      %p167 = scmp.ne.s32.totalorder %s156, %s157
      %p168 = scmp.eq.s32.totalorder %s29, 0
      %p169 = por %p167, %p168
      %p170 = scmp.ne.s32.totalorder %s156, %s157
      %p171 = scmp.eq.s32.totalorder %s30, 1
      %p172 = por %p170, %p171
      %p174 = scmp.ne.s32.totalorder %s157, %s173
      %p175 = scmp.eq.s32.totalorder %s30, 0
      %p176 = por %p174, %p175
      %p177 = scmp.le.s32.totalorder 1, %s24
      %p178 = scmp.lt.s32.totalorder %s24, 3
      %p179 = pnand %p177, %p178
      %p180 = pneg %p179
      // Predicated region
      $region9: #{tpu_custom_call.1} parent=5 // pred_check
        _
      $region10: #{tpu_custom_call.1} parent=5 // pred_check_branch
        %182 = sbr.rel (%p179) target = $region12
      $region11: #{tpu_custom_call.1} parent=5 // pred_region
        %s183 = ssub.s32 %s24, 1
        // Predicated region
        $region13: #{tpu_custom_call.1} parent=11 // pred_check
          %p184 = pneg %p120
        $region14: #{tpu_custom_call.1} parent=11 // pred_check_branch
          %186 = sbr.rel (%p184) target = $region16
        $region15: #{tpu_custom_call.1} parent=11 // pred_region
          %s188 = ssub.s32 512, 512
          %189 = vsyncadd [#allocation11], %s188
          %s190 = sshll.u32 [#allocation12], 4
          %s191 = int_to_ptr.vmem [resolvable:$true] %s190
          %196 = dma.hbm_to_vmem [thread:$0]  %s3, 512, %s191, [#allocation11], 128, 128, 8
        $region16: #{tpu_custom_call.1} parent=11 // pred_fallthru
          _
        // Predicated region
        $region17: #{tpu_custom_call.1} parent=11 // pred_check
          %p197 = pneg %p141
        $region18: #{tpu_custom_call.1} parent=11 // pred_check_branch
          %199 = sbr.rel (%p197) target = $region20
        $region19: #{tpu_custom_call.1} parent=11 // pred_region
          _
        $region20: #{tpu_custom_call.1} parent=11 // pred_fallthru
          _
      $region12: #{tpu_custom_call.1} parent=5 // pred_fallthru
        _
      %p200 = scmp.lt.s32.totalorder %s24, 2
      // Predicated region
      $region21: #{tpu_custom_call.1} parent=5 // pred_check
        %p201 = pneg %p200
      $region22: #{tpu_custom_call.1} parent=5 // pred_check_branch
        %203 = sbr.rel (%p201) target = $region24
      $region23: #{tpu_custom_call.1} parent=5 // pred_region
        // Predicated region
        $region25: #{tpu_custom_call.1} parent=23 // pred_check
          %p204 = pneg %p65
        $region26: #{tpu_custom_call.1} parent=23 // pred_check_branch
          %206 = sbr.rel (%p204) target = $region28
        $region27: #{tpu_custom_call.1} parent=23 // pred_region
          %s207 = sand.u32 %s55, 1
          %s208 = scalar_lea.sflag [#allocation8], %s207
          %s209 = sand.u32 %s55, 1
          %s210 = smul.addr %s209, 8
          %s211 = scalar_lea.vmem [#allocation7], %s210
          %s213 = ssub.s32 128, 128
          %214 = vsyncadd %s208, %s213
          %s215 = sadd.s32 %s32, %s31
          %s216 = smul.addr %s215, 128
          %s217 = scalar_lea.hbm %s1, %s216
          %s219 = sshll.u32 %s211, 4
          %s220 = int_to_ptr.vmem [resolvable:$true] %s219
          %222 = dma.hbm_to_vmem [thread:$0]  %s217, 128, %s220, %s208
        $region28: #{tpu_custom_call.1} parent=23 // pred_fallthru
          _
        // Predicated region
        $region29: #{tpu_custom_call.1} parent=23 // pred_check
          %p223 = pneg %p93
        $region30: #{tpu_custom_call.1} parent=23 // pred_check_branch
          %225 = sbr.rel (%p223) target = $region32
        $region31: #{tpu_custom_call.1} parent=23 // pred_region
          %s226 = sand.u32 %s24, 1
          %s227 = scalar_lea.sflag [#allocation11], %s226
          %s228 = sand.u32 %s83, 1
          %s229 = smul.addr %s228, 8
          %s230 = scalar_lea.vmem [#allocation10], %s229
          %s232 = ssub.s32 128, 128
          %233 = vsyncadd %s227, %s232
          %s234 = sadd.s32 %s33, %s31
          %s235 = smul.addr %s234, 128
          %s236 = scalar_lea.hbm %s2, %s235
          %s238 = sshll.u32 %s230, 4
          %s239 = int_to_ptr.vmem [resolvable:$true] %s238
          %241 = dma.hbm_to_vmem [thread:$0]  %s236, 128, %s239, %s227
        $region32: #{tpu_custom_call.1} parent=23 // pred_fallthru
          _
      $region24: #{tpu_custom_call.1} parent=5 // pred_fallthru
        _
      %p242 = scmp.le.s32.totalorder 1, %s24
      %p243 = scmp.lt.s32.totalorder %s24, 3
      %p244 = pnand %p242, %p243
      %p245 = pneg %p244
      // Predicated region
      $region33: #{tpu_custom_call.1} parent=5 // pred_check
        _
      $region34: #{tpu_custom_call.1} parent=5 // pred_check_branch
        %247 = sbr.rel (%p244) target = $region36
      $region35: #{tpu_custom_call.1} parent=5 // pred_region
        %s248 = ssub.s32 %s24, 1
        %s249 = sand.u32 %s58, 1
        %s250 = scalar_lea.sflag [#allocation8], %s249
        %s251 = sand.u32 %s58, 1
        %s252 = smul.addr %s251, 8
        %s253 = scalar_lea.vmem [#allocation7], %s252
        // Predicated region
        $region37: #{tpu_custom_call.1} parent=35 // pred_check
          %p254 = pneg %p71
        $region38: #{tpu_custom_call.1} parent=35 // pred_check_branch
          %256 = sbr.rel (%p254) target = $region40
        $region39: #{tpu_custom_call.1} parent=35 // pred_region
          %257 = dma.done %s250, 128
        $region40: #{tpu_custom_call.1} parent=35 // pred_fallthru
          _
        %s258 = sand.u32 %s29, 1
        %s259 = scalar_lea.sflag [#allocation11], %s258
        %s260 = sand.u32 %s86, 1
        %s261 = smul.addr %s260, 8
        %s262 = scalar_lea.vmem [#allocation10], %s261
        // Predicated region
        $region41: #{tpu_custom_call.1} parent=35 // pred_check
          %p263 = pneg %p99
        $region42: #{tpu_custom_call.1} parent=35 // pred_check_branch
          %265 = sbr.rel (%p263) target = $region44
        $region43: #{tpu_custom_call.1} parent=35 // pred_region
          %266 = dma.done %s259, 128
        $region44: #{tpu_custom_call.1} parent=35 // pred_fallthru
          _
        // Predicated region
        $region45: #{tpu_custom_call.1} parent=35 // pred_check
          %p267 = pneg %p120
        $region46: #{tpu_custom_call.1} parent=35 // pred_check_branch
          %269 = sbr.rel (%p267) target = $region48
        $region47: #{tpu_custom_call.1} parent=35 // pred_region
          %270 = dma.done [#allocation11], 512
        $region48: #{tpu_custom_call.1} parent=35 // pred_fallthru
          _
        %s271 = sand.u32 %s58, 1
        %s272 = scalar_lea.sflag [#allocation8], %s271
        %s273 = sand.u32 %s58, 1
        %s274 = smul.addr %s273, 8
        %s275 = scalar_lea.vmem [#allocation7], %s274
        %p276 = pneg %p71
        %p277 = pneg %p68
        %s278 = sand.u32 %s29, 1
        %s279 = scalar_lea.sflag [#allocation11], %s278
        %s280 = sand.u32 %s86, 1
        %s281 = smul.addr %s280, 8
        %s282 = scalar_lea.vmem [#allocation10], %s281
        %p283 = pneg %p99
        %p284 = pneg %p96
        %p285 = pneg %p120
        %p286 = pneg %p117
        %p287 = pneg %p141
        %p288 = pneg %p138
        %p289 = pneg %p169
        %p290 = pneg %p166
        %s291 = sand.u32 %s156, 1
        %s292 = scalar_lea.sflag [#allocation9], %s291
        %s293 = sand.u32 %s156, 1
        %s294 = smul.addr %s293, 8
        %s295 = scalar_lea.vmem [#allocation13], %s294
        %p296 = scmp.eq.s32.totalorder %s36, 0
        // Predicated region
        $region49: #{tpu_custom_call.1} parent=35 // pred_check
          %p297 = pneg %p296
        $region50: #{tpu_custom_call.1} parent=35 // pred_check_branch
          %299 = sbr.rel (%p297) target = $region52
        $region51: #{tpu_custom_call.1} parent=35 // pred_region
          %v300 = vld [vmem:[%s253] sm:$0xff]
          %v301 = vld [vmem:[#allocation12] sm:$0xff]
          %v302 = vld [vmem:[#allocation12 + $0x8] sm:$0xff]
          %v303 = vld [vmem:[#allocation12 + $0x10] sm:$0xff]
          %v304 = vld [vmem:[#allocation12 + $0x18] sm:$0xff]
          %v305 = vld [vmem:[%s4] sm:$0x1]
          %v307 = vlaneseq
          %v308 = vshrl.u32 %v307, 7
          %v309 = vsub.s32 0, %v308
          %v310 = vrot.slane %v305, %v309
          %vm312 = vcmask 261120
          %v314 = vsel %vm312, %v300, 0
          %v317 = vsel %vm312, %v301, 0
          %v320 = vsel %vm312, %v302, 0
          %v323 = vsel %vm312, %v303, 0
          %v326 = vsel %vm312, %v304, 0
          %328 = vmatprep.subr.mxu0 0.0
          %329 = vmatpush1.xpose.msra.mxu0 %v317
          %330 = vmatprep.subr.mxu0 0.0
          %331 = vmatpush1.xpose.msra.mxu0 %v320
          %332 = vmatprep.subr.mxu0 0.0
          %333 = vmatpush1.xpose.msra.mxu0 %v323
          %334 = vmatprep.subr.mxu0 0.0
          %335 = vmatpush1.xpose.msra.mxu0 %v326
          %336 = vmatprep.subr.mxu0 0.0
          %337 = vmatpush1.xpose.msra.mxu0 0.0
          %338 = vmatprep.subr.mxu0 0.0
          %339 = vmatpush1.xpose.msra.mxu0 0.0
          %340 = vmatprep.subr.mxu0 0.0
          %341 = vmatpush1.xpose.msra.mxu0 0.0
          %342 = vmatprep.subr.mxu0 0.0
          %343 = vmatpush1.xpose.msra.mxu0 0.0
          %344 = vmatprep.subr.mxu0 0.0
          %345 = vmatpush1.xpose.msra.mxu0 0.0
          %346 = vmatprep.subr.mxu0 0.0
          %347 = vmatpush1.xpose.msra.mxu0 0.0
          %348 = vmatprep.subr.mxu0 0.0
          %349 = vmatpush1.xpose.msra.mxu0 0.0
          %350 = vmatprep.subr.mxu0 0.0
          %351 = vmatpush1.xpose.msra.mxu0 0.0
          %352 = vmatprep.subr.mxu0 0.0
          %353 = vmatpush1.xpose.msra.mxu0 0.0
          %354 = vmatprep.subr.mxu0 0.0
          %355 = vmatpush1.xpose.msra.mxu0 0.0
          %356 = vmatprep.subr.mxu0 0.0
          %357 = vmatpush1.xpose.msra.mxu0 0.0
          %358 = vmatprep.subr.mxu0 0.0
          %359 = vmatpush1.xpose.msra.mxu0 0.0
          %360 = vmatprep.subr.mxu0 0.0
          %361 = vmatpush1.xpose.msra.mxu0 0.0
          %362 = vmatprep.subr.mxu0 0.0
          %363 = vmatpush1.xpose.msra.mxu0 0.0
          %364 = vmatprep.subr.mxu0 0.0
          %365 = vmatpush1.xpose.msra.mxu0 0.0
          %366 = vmatprep.subr.mxu0 0.0
          %367 = vmatpush1.xpose.msra.mxu0 0.0
          %368 = vmatprep.subr.mxu0 0.0
          %369 = vmatpush1.xpose.msra.mxu0 0.0
          %370 = vmatprep.subr.mxu0 0.0
          %371 = vmatpush1.xpose.msra.mxu0 0.0
          %372 = vmatprep.subr.mxu0 0.0
          %373 = vmatpush1.xpose.msra.mxu0 0.0
          %374 = vmatprep.subr.mxu0 0.0
          %375 = vmatpush1.xpose.msra.mxu0 0.0
          %376 = vmatprep.subr.mxu0 0.0
          %377 = vmatpush1.xpose.msra.mxu0 0.0
          %378 = vmatprep.subr.mxu0 0.0
          %379 = vmatpush1.xpose.msra.mxu0 0.0
          %380 = vmatprep.subr.mxu0 0.0
          %381 = vmatpush1.xpose.msra.mxu0 0.0
          %382 = vmatprep.subr.mxu0 0.0
          %383 = vmatpush1.xpose.msra.mxu0 0.0
          %384 = vmatprep.subr.mxu0 0.0
          %385 = vmatpush1.xpose.msra.mxu0 0.0
          %386 = vmatprep.subr.mxu0 0.0
          %387 = vmatpush1.xpose.msra.mxu0 0.0
          %388 = vmatprep.subr.mxu0 0.0
          %389 = vmatpush1.xpose.msra.mxu0 0.0
          %390 = vmatprep.subr.mxu0 0.0
          %391 = vmatpush1.xpose.msra.mxu0 0.0
          %392 = vmatprep.mubr.f32.mxu0 0.0
          %393 = vmatmul.mubr.f32.gmra.mrb[0].mxu0 %v314
          %v394 = vpop.f32.mrb[0].mxu0
          %v395 = vadd.f32 %v310, %v394
          %v396 = vpop.f32.mrb[0].mxu0
          %397 = vdwg.mxu0
          %398 = vst.msk [vmem:[#allocation2] sm:$0xff] %vm312, %v395
          %399 = vst.msk [vmem:[#allocation3] sm:$0xff] %vm312, 0.0
          %vm400 = vcmask 7168
          %401 = vst.msk [vmem:[#allocation4] sm:$0xff] %vm400, 0.0
        $region52: #{tpu_custom_call.1} parent=35 // pred_fallthru
          _
        %v402 = vld [vmem:[%s262] sm:$0xff]
        %v403 = vld [vmem:[#allocation2] sm:$0xff]
        %vm404 = vcmask 261120
        %v406 = vsel %vm404, %v403, 0
        %v409 = vsel %vm404, %v402, 0
        %411 = vmatprep.subr.mxu0 0.0
        %412 = vmatpush1.xpose.msra.mxu0 %v409
        %413 = vmatprep.subr.mxu0 0.0
        %414 = vmatpush1.xpose.msra.mxu0 0.0
        %415 = vmatprep.subr.mxu0 0.0
        %416 = vmatpush1.xpose.msra.mxu0 0.0
        %417 = vmatprep.subr.mxu0 0.0
        %418 = vmatpush1.xpose.msra.mxu0 0.0
        %419 = vmatprep.subr.mxu0 0.0
        %420 = vmatpush1.xpose.msra.mxu0 0.0
        %421 = vmatprep.subr.mxu0 0.0
        %422 = vmatpush1.xpose.msra.mxu0 0.0
        %423 = vmatprep.subr.mxu0 0.0
        %424 = vmatpush1.xpose.msra.mxu0 0.0
        %425 = vmatprep.subr.mxu0 0.0
        %426 = vmatpush1.xpose.msra.mxu0 0.0
        %427 = vmatprep.subr.mxu0 0.0
        %428 = vmatpush1.xpose.msra.mxu0 0.0
        %429 = vmatprep.subr.mxu0 0.0
        %430 = vmatpush1.xpose.msra.mxu0 0.0
        %431 = vmatprep.subr.mxu0 0.0
        %432 = vmatpush1.xpose.msra.mxu0 0.0
        %433 = vmatprep.subr.mxu0 0.0
        %434 = vmatpush1.xpose.msra.mxu0 0.0
        %435 = vmatprep.subr.mxu0 0.0
        %436 = vmatpush1.xpose.msra.mxu0 0.0
        %437 = vmatprep.subr.mxu0 0.0
        %438 = vmatpush1.xpose.msra.mxu0 0.0
        %439 = vmatprep.subr.mxu0 0.0
        %440 = vmatpush1.xpose.msra.mxu0 0.0
        %441 = vmatprep.subr.mxu0 0.0
        %442 = vmatpush1.xpose.msra.mxu0 0.0
        %443 = vmatprep.subr.mxu0 0.0
        %444 = vmatpush1.xpose.msra.mxu0 0.0
        %445 = vmatprep.subr.mxu0 0.0
        %446 = vmatpush1.xpose.msra.mxu0 0.0
        %447 = vmatprep.subr.mxu0 0.0
        %448 = vmatpush1.xpose.msra.mxu0 0.0
        %449 = vmatprep.subr.mxu0 0.0
        %450 = vmatpush1.xpose.msra.mxu0 0.0
        %451 = vmatprep.subr.mxu0 0.0
        %452 = vmatpush1.xpose.msra.mxu0 0.0
        %453 = vmatprep.subr.mxu0 0.0
        %454 = vmatpush1.xpose.msra.mxu0 0.0
        %455 = vmatprep.subr.mxu0 0.0
        %456 = vmatpush1.xpose.msra.mxu0 0.0
        %457 = vmatprep.subr.mxu0 0.0
        %458 = vmatpush1.xpose.msra.mxu0 0.0
        %459 = vmatprep.subr.mxu0 0.0
        %460 = vmatpush1.xpose.msra.mxu0 0.0
        %461 = vmatprep.subr.mxu0 0.0
        %462 = vmatpush1.xpose.msra.mxu0 0.0
        %463 = vmatprep.subr.mxu0 0.0
        %464 = vmatpush1.xpose.msra.mxu0 0.0
        %465 = vmatprep.subr.mxu0 0.0
        %466 = vmatpush1.xpose.msra.mxu0 0.0
        %467 = vmatprep.subr.mxu0 0.0
        %468 = vmatpush1.xpose.msra.mxu0 0.0
        %469 = vmatprep.subr.mxu0 0.0
        %470 = vmatpush1.xpose.msra.mxu0 0.0
        %471 = vmatprep.subr.mxu0 0.0
        %472 = vmatpush1.xpose.msra.mxu0 0.0
        %473 = vmatprep.subr.mxu0 0.0
        %474 = vmatpush1.xpose.msra.mxu0 0.0
        %475 = vmatprep.mubr.f32.mxu0 0.0
        %476 = vmatmul.mubr.f32.gmra.mrb[0].mxu0 %v406
        %v477 = vpop.f32.mrb[0].mxu0
        %v478 = vadd.f32 0.0, %v477
        %v479 = vpop.f32.mrb[0].mxu0
        %480 = vdwg.mxu0
        %v481 = vtanh.pop %v478
        %v482 = vmul.f32 %v481, 1.442695
        %v483 = vpow.pop %v482
        %s484 = sld [smem:[#allocation6 + %s34]]
        %v485 = vlaneseq
        %v486 = vand.u32 %v485, 127
        %s487 = smul.u32 %s36, 8
        %v488 = vstv %s487
        %v489 = vadd.s32 %v486, %v488
        %v490 = vstv %s484
        %vm491 = vcmp.lt.s32.totalorder %v489, %v490
        %v492 = vsel %vm491, %v483, 0.0
        %v493 = vld [vmem:[#allocation4] sm:$0xff]
        %vm494 = vcmask 64512
        %v495 = vsel %vm494, %v492, 0.0
        %496 = vadd.xlane.f32.xlu0 %v495
        %v497 = vpop.xlane.xlu0 %496
        %v498 = vadd.f32 %v493, %v497
        %vm499 = vcmask 7168
        %500 = vst.msk [vmem:[#allocation4] sm:$0xff] %vm499, %v498
        %v501 = vld [vmem:[#allocation3] sm:$0xff]
        %v503 = vsel %vm494, %v492, 0
        %505 = vmatprep.subr.mxu0 0.0
        %506 = vmatpush1.msra.mxu0 %v402
        %507 = vmatprep.subr.mxu0 0.0
        %508 = vmatpush1.msra.mxu0 0.0
        %509 = vmatprep.subr.mxu0 0.0
        %510 = vmatpush1.msra.mxu0 0.0
        %511 = vmatprep.subr.mxu0 0.0
        %512 = vmatpush1.msra.mxu0 0.0
        %513 = vmatprep.subr.mxu0 0.0
        %514 = vmatpush1.msra.mxu0 0.0
        %515 = vmatprep.subr.mxu0 0.0
        %516 = vmatpush1.msra.mxu0 0.0
        %517 = vmatprep.subr.mxu0 0.0
        %518 = vmatpush1.msra.mxu0 0.0
        %519 = vmatprep.subr.mxu0 0.0
        %520 = vmatpush1.msra.mxu0 0.0
        %521 = vmatprep.subr.mxu0 0.0
        %522 = vmatpush1.msra.mxu0 0.0
        %523 = vmatprep.subr.mxu0 0.0
        %524 = vmatpush1.msra.mxu0 0.0
        %525 = vmatprep.subr.mxu0 0.0
        %526 = vmatpush1.msra.mxu0 0.0
        %527 = vmatprep.subr.mxu0 0.0
        %528 = vmatpush1.msra.mxu0 0.0
        %529 = vmatprep.subr.mxu0 0.0
        %530 = vmatpush1.msra.mxu0 0.0
        %531 = vmatprep.subr.mxu0 0.0
        %532 = vmatpush1.msra.mxu0 0.0
        %533 = vmatprep.subr.mxu0 0.0
        %534 = vmatpush1.msra.mxu0 0.0
        %535 = vmatprep.subr.mxu0 0.0
        %536 = vmatpush1.msra.mxu0 0.0
        %537 = vmatprep.subr.mxu0 0.0
        %538 = vmatpush1.msra.mxu0 0.0
        %539 = vmatprep.subr.mxu0 0.0
        %540 = vmatpush1.msra.mxu0 0.0
        %541 = vmatprep.subr.mxu0 0.0
        %542 = vmatpush1.msra.mxu0 0.0
        %543 = vmatprep.subr.mxu0 0.0
        %544 = vmatpush1.msra.mxu0 0.0
        %545 = vmatprep.subr.mxu0 0.0
        %546 = vmatpush1.msra.mxu0 0.0
        %547 = vmatprep.subr.mxu0 0.0
        %548 = vmatpush1.msra.mxu0 0.0
        %549 = vmatprep.subr.mxu0 0.0
        %550 = vmatpush1.msra.mxu0 0.0
        %551 = vmatprep.subr.mxu0 0.0
        %552 = vmatpush1.msra.mxu0 0.0
        %553 = vmatprep.subr.mxu0 0.0
        %554 = vmatpush1.msra.mxu0 0.0
        %555 = vmatprep.subr.mxu0 0.0
        %556 = vmatpush1.msra.mxu0 0.0
        %557 = vmatprep.subr.mxu0 0.0
        %558 = vmatpush1.msra.mxu0 0.0
        %559 = vmatprep.subr.mxu0 0.0
        %560 = vmatpush1.msra.mxu0 0.0
        %561 = vmatprep.subr.mxu0 0.0
        %562 = vmatpush1.msra.mxu0 0.0
        %563 = vmatprep.subr.mxu0 0.0
        %564 = vmatpush1.msra.mxu0 0.0
        %565 = vmatprep.subr.mxu0 0.0
        %566 = vmatpush1.msra.mxu0 0.0
        %567 = vmatprep.subr.mxu0 0.0
        %568 = vmatpush1.msra.mxu0 0.0
        %569 = vmatprep.mubr.f32.mxu0 0.0
        %570 = vmatmul.mubr.f32.gmra.mrb[0].mxu0 %v503
        %v571 = vpop.f32.mrb[0].mxu0
        %v572 = vadd.f32 0.0, %v571
        %v573 = vpop.f32.mrb[0].mxu0
        %574 = vdwg.mxu0
        %v575 = vadd.f32 %v501, %v572
        %576 = vst.msk [vmem:[#allocation3] sm:$0xff] %vm404, %v575
        // Predicated region
        $region53: #{tpu_custom_call.1} parent=35 // pred_check
          %p577 = pneg %p296
        $region54: #{tpu_custom_call.1} parent=35 // pred_check_branch
          %579 = sbr.rel (%p577) target = $region56
        $region55: #{tpu_custom_call.1} parent=35 // pred_region
          %v580 = vld [vmem:[#allocation3] sm:$0xff]
          %v581 = vld [vmem:[#allocation4] sm:$0xff]
          %v582 = vrcp.pop %v581
          %584 = vset.pattern.permute.xlu0 0
          %585 = vperm.xlu0 %584, %v582
          %v586 = vpop.permute.xlu0 %585
          %v588 = vmul.f32 %v580, %v586
          %589 = vst.msk [vmem:[%s295] sm:$0xff] %vm404, %v588
        $region56: #{tpu_custom_call.1} parent=35 // pred_fallthru
          _
        %s590 = sand.u32 %s156, 1
        %s591 = scalar_lea.sflag [#allocation9], %s590
        %s592 = sand.u32 %s156, 1
        %s593 = smul.addr %s592, 8
        %s594 = scalar_lea.vmem [#allocation13], %s593
        // Predicated region
        $region57: #{tpu_custom_call.1} parent=35 // pred_check
          %p595 = pneg %p166
        $region58: #{tpu_custom_call.1} parent=35 // pred_check_branch
          %597 = sbr.rel (%p595) target = $region60
        $region59: #{tpu_custom_call.1} parent=35 // pred_region
          %s599 = ssub.s32 128, 128
          %600 = vsyncadd %s591, %s599
          %s601 = sadd.s32 %s35, %s34
          %s602 = smul.addr %s601, 128
          %s603 = scalar_lea.hbm %s5, %s602
          %s605 = sshll.u32 %s594, 4
          %s606 = int_to_ptr.vmem [resolvable:$true] %s605
          %608 = dma.vmem_to_hbm [thread:$0]  %s606, 128, %s603, %s591
        $region60: #{tpu_custom_call.1} parent=35 // pred_fallthru
          _
      $region36: #{tpu_custom_call.1} parent=5 // pred_fallthru
        _
      %p609 = scmp.le.s32.totalorder 2, %s24
      // Predicated region
      $region61: #{tpu_custom_call.1} parent=5 // pred_check
        %p610 = pneg %p609
      $region62: #{tpu_custom_call.1} parent=5 // pred_check_branch
        %612 = sbr.rel (%p610) target = $region64
      $region63: #{tpu_custom_call.1} parent=5 // pred_region
        %s613 = ssub.s32 %s24, 2
        // Predicated region
        $region65: #{tpu_custom_call.1} parent=63 // pred_check
          %p614 = pneg %p172
        $region66: #{tpu_custom_call.1} parent=63 // pred_check_branch
          %616 = sbr.rel (%p614) target = $region68
        $region67: #{tpu_custom_call.1} parent=63 // pred_region
          %s617 = sand.u32 %s157, 1
          %s618 = scalar_lea.sflag [#allocation9], %s617
          %s619 = sand.u32 %s157, 1
          %s620 = smul.addr %s619, 8
          %s621 = scalar_lea.vmem [#allocation13], %s620
          %622 = dma.done %s618, 128
        $region68: #{tpu_custom_call.1} parent=63 // pred_fallthru
          _
      $region64: #{tpu_custom_call.1} parent=5 // pred_fallthru
        _
    $region6: #{tpu_custom_call.1} parent=1 // loop_footer
      %s28 = sadd.s32 1, %s24
    $region7: #{tpu_custom_call.1} parent=1 // loop_footer_branch
      %23 = sbr.rel target = $region3
    $region8: #{tpu_custom_call.1} parent=1 // loop_exit
      _
    %623 = vsyncpa [#allocation8], 1
    %s624 = scalar_lea.sflag [#allocation8], 1
    %625 = vsyncpa %s624, 1
    %626 = vsyncpa [#allocation11], 1
    %s627 = scalar_lea.sflag [#allocation11], 1
    %628 = vsyncpa %s627, 1
    %629 = vsyncpa [#allocation9], 1
    %s630 = scalar_lea.sflag [#allocation9], 1
    %631 = vsyncpa %s630, 1

</llo_original>
